<compile_context>
chip_gen: v5e
topology: v5e:2x2
jax: 0.10.0
libtpu: 0.0.40
codegen_flags: <defaults>
</compile_context>

<pallas_src>
import functools

import jax
import jax.numpy as jnp
from jax.experimental import pallas as pl
from jax.experimental.pallas import tpu as pltpu


def _choose_tile(dim: int, target: int, align: int):
    """Return (tile, padded_dim); tile is always <= max(target, small-dim).

    * dim <= target: full-dimension block (always a legal BlockSpec), no pad.
    * otherwise: largest aligned divisor of dim <= target if one exists;
      else tile = aligned target and dim is zero-padded up to a multiple of it.
    """
    if dim <= target:
        return dim, dim
    t = (target // align) * align
    best = t
    while t >= align:
        if dim % t == 0:
            return t, dim
        t -= align
    padded = ((dim + best - 1) // best) * best
    return best, padded


def _make_kernel(*, alpha: float, a_zp: float, b_zp: float, out_zp: float,
                 o_alpha: float, k_total: int, use_int8_mxu: bool):
    """Build the Pallas kernel, closing over compile-time quant params."""
    scale = float(alpha) / float(o_alpha)
    zp_const = float(a_zp) * float(b_zp) * float(k_total)
    need_rsum = float(b_zp) != 0.0   # rowsum(A) correction (x b_zp)
    need_csum = float(a_zp) != 0.0   # colsum(B) correction (x a_zp)

    def kernel(x_ref, y_ref, rsum_ref, csum_ref, o_ref, acc_ref):
        k = pl.program_id(3)

        @pl.when(k == 0)
        def _init():
            acc_ref[...] = jnp.zeros_like(acc_ref)

        # Hot loop: nothing but the MXU matmul + accumulator RMW.
        if use_int8_mxu:
            acc_ref[...] += jnp.dot(x_ref[...], y_ref[...],
                                    preferred_element_type=jnp.int32)
        else:
            # Chips without an int MXU (e.g. v7x): int8 values are exactly
            # representable in bf16; products are exact, f32 accumulation is
            # exact while K <= ~1040 (asserted in the wrapper).
            acc_ref[...] += jnp.dot(x_ref[...].astype(jnp.bfloat16),
                                    y_ref[...].astype(jnp.bfloat16),
                                    preferred_element_type=jnp.float32)

        @pl.when(k == pl.num_programs(3) - 1)
        def _finalize():
            res = acc_ref[...].astype(jnp.float32)
            if need_csum:
                res = res - jnp.float32(a_zp) * csum_ref[...]
            if need_rsum:
                res = res - jnp.float32(b_zp) * rsum_ref[...]
            res = res + jnp.float32(zp_const)
            # Requantize: * alpha / o_alpha, + out_zp, clamp, truncate to int8
            # (float -> int8 cast truncates toward zero like torch .to(int8)).
            q = res * jnp.float32(scale) + jnp.float32(out_zp)
            q = jnp.clip(q, -128.0, 127.0)
            o_ref[...] = q.astype(jnp.int8)

    return kernel


@functools.partial(jax.jit, static_argnames=("alpha", "a_zp", "b_zp",
                                             "out_zp", "o_alpha", "tile_hint"))
def bmm_s8ts8ns8t(x, y, *, alpha: float, a_zp: float, b_zp: float,
                  out_zp: float, o_alpha: float, tile_hint=None):
    """Quantized batched matmul: x [B,M,K] int8, y [B,K,N] int8 -> [B,M,N] int8."""
    B, M, K = x.shape
    B2, K2, N = y.shape
    assert B == B2 and K == K2, "shape mismatch"

    # Generation dispatch.
    kind = jax.devices()[0].device_kind.lower()
    use_int8_mxu = any(t in kind for t in ("v4", "v5", "v6"))
    two_tensorcores = "v7" in kind

    if use_int8_mxu:
        # int32 accumulator exactness bound.
        assert 127 * 127 * K < 2 ** 31, "K too large for int32 accumulation"
    else:
        # TODO(synk): split int8 operands into hi/lo halves (two matmuls) to
        # support K > ~1040 exactly on chips without an int8 MXU path.
        assert K <= 1040, "f32 accumulation only exact for K <= ~1040 (bf16 MXU path)"

    # Tile targets per generation (tk big first: amortizes the tm*tn*4B
    # accumulator RMW that pressures the single vector-store slot; then tm/tn
    # for HBM reuse).  Footprints stay well inside scoped-VMEM budgets:
    #   v6e: ~16 MiB of 128 MiB;  v5e: ~6 MiB;  v7x/other: ~9 MiB of 64 MiB/TC.
    if tile_hint is not None:
        tm_t, tn_t, tk_t = tile_hint
        m_align = 8
    elif "v6" in kind:
        tm_t, tn_t, tk_t, m_align = 512, 2048, 2048, 256
    elif "v5" in kind or "v4" in kind:
        tm_t, tn_t, tk_t, m_align = 512, 1024, 1024, 128
    else:  # v7x / unknown: budget against 64 MiB/TC VMEM
        tm_t, tn_t, tk_t, m_align = 512, 1024, 2048, 256

    tm, Mp = _choose_tile(M, tm_t, m_align)
    tn, Np = _choose_tile(N, tn_t, 128)
    tk, Kp = _choose_tile(K, tk_t, 128)

    # On 2-TensorCore chips, expose >= 2 parallel grid iterations.
    if two_tensorcores:
        while B * (Mp // tm) * (Np // tn) < 2:
            if tn % 256 == 0:
                tn //= 2
            elif tm % 16 == 0:
                tm //= 2
            else:
                break

    # Zero padding is exact: padded K contributes 0 to the matmul and to the
    # row/col sums; padded M/N rows/cols are sliced off; zp_const uses the
    # ORIGINAL K.
    x_p = x if (Mp == M and Kp == K) else jnp.pad(x, ((0, 0), (0, Mp - M), (0, Kp - K)))
    y_p = y if (Kp == K and Np == N) else jnp.pad(y, ((0, 0), (0, Kp - K), (0, Np - N)))

    # Hoisted zero-point correction sums (computed once, outside the hot loop).
    rsum = jnp.sum(x_p.astype(jnp.int32), axis=2, keepdims=True).astype(jnp.float32)
    csum = jnp.sum(y_p.astype(jnp.int32), axis=1, keepdims=True).astype(jnp.float32)

    grid = (B, Mp // tm, Np // tn, Kp // tk)
    acc_dtype = jnp.int32 if use_int8_mxu else jnp.float32

    # Double-buffered inputs/output + accumulator + (tiny) sum buffers.
    footprint = (2 * (tm * tk + tk * tn) + 2 * tm * tn + tm * tn * 4
                 + 2 * 4 * (tm + tn))
    vmem_cap = (96 << 20) if use_int8_mxu else (48 << 20)
    vmem_limit = int(min(2 * footprint + (16 << 20), vmem_cap))

    kernel = _make_kernel(alpha=alpha, a_zp=a_zp, b_zp=b_zp, out_zp=out_zp,
                          o_alpha=o_alpha, k_total=K,
                          use_int8_mxu=use_int8_mxu)

    out_p = pl.pallas_call(
        kernel,
        out_shape=jax.ShapeDtypeStruct((B, Mp, Np), jnp.int8),
        grid_spec=pltpu.PrefetchScalarGridSpec(
            num_scalar_prefetch=0,
            grid=grid,  # (B, M-tiles, N-tiles, K-tiles); K innermost
            in_specs=[
                pl.BlockSpec((pl.Squeezed(), tm, tk),
                             lambda b, i, j, k: (b, i, k)),
                pl.BlockSpec((pl.Squeezed(), tk, tn),
                             lambda b, i, j, k: (b, k, j)),
                pl.BlockSpec((pl.Squeezed(), tm, 1),
                             lambda b, i, j, k: (b, i, 0)),
                pl.BlockSpec((pl.Squeezed(), 1, tn),
                             lambda b, i, j, k: (b, 0, j)),
            ],
            out_specs=pl.BlockSpec((pl.Squeezed(), tm, tn),
                                   lambda b, i, j, k: (b, i, j)),
            scratch_shapes=[
                pltpu.VMEM((tm, tn), acc_dtype),     # matmul accumulator
            ],
        ),
        compiler_params=pltpu.CompilerParams(
            dimension_semantics=("parallel", "parallel", "parallel",
                                 "arbitrary"),
            vmem_limit_bytes=vmem_limit),
        cost_estimate=pl.CostEstimate(
            flops=2 * B * Mp * Np * Kp,
            transcendentals=0,
            # include re-fetch of A (N/tn times) and B (M/tm times)
            bytes_accessed=B * (Mp * Kp * (Np // tn) + Kp * Np * (Mp // tm)
                                + Mp * Np),
        ),
    )(x_p, y_p, rsum, csum)

    if Mp != M or Np != N:
        out_p = out_p[:, :M, :N]
    return out_p


def _reference(x, y, *, alpha, a_zp, b_zp, out_zp, o_alpha, tile_hint=None):
    a = x.astype(jnp.int32).astype(jnp.float32) - jnp.float32(a_zp)
    b = y.astype(jnp.int32).astype(jnp.float32) - jnp.float32(b_zp)
    q = jnp.einsum("bmk,bkn->bmn", a, b,
                   preferred_element_type=jnp.float32) * alpha / o_alpha
    return jnp.clip(q + out_zp, -128, 127).astype(jnp.int8)


def _check(x, y, params, **extra):
    out = jax.block_until_ready(bmm_s8ts8ns8t(x, y, **params, **extra))
    ref = _reference(x, y, **params)
    assert out.shape == ref.shape and out.dtype == jnp.int8
    # Allow off-by-one at truncation boundaries due to fp rounding order.
    err = int(jnp.max(jnp.abs(out.astype(jnp.int32) - ref.astype(jnp.int32))))
    assert err <= 1, f"max abs error {err}"


if __name__ == "__main__":
    a_scale, b_scale, o_scale = 0.05, 0.07, 0.5
    params = dict(
        alpha=a_scale * b_scale,   # alpha = a_scale * b_scale
        a_zp=3.0,
        b_zp=-2.0,
        out_zp=5.0,
        o_alpha=o_scale,
    )

    key = jax.random.PRNGKey(0)
    k1, k2, k3, k4, k5, k6 = jax.random.split(key, 6)

    # Small, deterministic test (single block per batch element).
    B, M, K, N = 2, 16, 32, 128
    x = jax.random.randint(k1, (B, M, K), -128, 128,
                           dtype=jnp.int32).astype(jnp.int8)
    y = jax.random.randint(k2, (B, K, N), -128, 128,
                           dtype=jnp.int32).astype(jnp.int8)
    _check(x, y, params)

    # Larger test exercising M/N/K tiling and the K-accumulator path
    # (tile_hint forces multiple K steps regardless of generation defaults).
    # Reduced value range keeps the fp32 reference exact.
    B2_, M2, K2_, N2 = 2, 512, 1024, 256
    x2 = jax.random.randint(k3, (B2_, M2, K2_), -64, 64,
                            dtype=jnp.int32).astype(jnp.int8)
    y2 = jax.random.randint(k4, (B2_, K2_, N2), -64, 64,
                            dtype=jnp.int32).astype(jnp.int8)
    _check(x2, y2, params, tile_hint=(256, 256, 256))
    _check(x2, y2, params)   # generation-default (large-tile) path

    # Non-divisible N: exercises the zero-padding path (no full-dim fallback).
    B3_, M3, K3_, N3 = 1, 40, 96, 2100
    x3 = jax.random.randint(k5, (B3_, M3, K3_), -128, 128,
                            dtype=jnp.int32).astype(jnp.int8)
    y3 = jax.random.randint(k6, (B3_, K3_, N3), -128, 128,
                            dtype=jnp.int32).astype(jnp.int8)
    _check(x3, y3, params)

    print("KERNEL_OK")
</pallas_src>

<mosaic_0001>
module attributes {stable_mosaic.version = 11 : i64} {
  func.func @kernel(%arg0: i32, %arg1: i32, %arg2: i32, %arg3: i32, %arg4: memref<1x16x32xi8, #tpu.memory_space<vmem>>, %arg5: memref<1x32x128xi8, #tpu.memory_space<vmem>>, %arg6: memref<1x16x1xf32, #tpu.memory_space<vmem>>, %arg7: memref<1x1x128xf32, #tpu.memory_space<vmem>>, %arg8: memref<1x16x128xi8, #tpu.memory_space<vmem>>, %arg9: memref<16x128xf32, #tpu.memory_space<vmem>>) attributes {dimension_semantics = [#tpu.dimension_semantics<parallel>, #tpu.dimension_semantics<parallel>, #tpu.dimension_semantics<parallel>, #tpu.dimension_semantics<arbitrary>], iteration_bounds = array<i64: 2, 1, 1, 1>, scalar_prefetch = 0 : i64, scratch_operands = 1 : i64, tpu.core_type = #tpu.core_type<tc>, window_params = [{transform_indices = @transform_0, window_bounds = array<i64: 1, 16, 32>}, {transform_indices = @transform_1, window_bounds = array<i64: 1, 32, 128>}, {transform_indices = @transform_2, window_bounds = array<i64: 1, 16, 1>}, {transform_indices = @transform_3, window_bounds = array<i64: 1, 1, 128>}, {transform_indices = @transform_4, window_bounds = array<i64: 1, 16, 128>}]} {
    %c0_i32 = arith.constant 0 : i32
    %0 = arith.cmpi eq, %arg3, %c0_i32 : i32
    %1 = arith.extui %0 : i1 to i32
    %c0_i32_0 = arith.constant 0 : i32
    %2 = arith.cmpi ne, %1, %c0_i32_0 : i32
    scf.if %2 {
      %cst_12 = arith.constant 0.000000e+00 : f32
      %16 = vector.broadcast %cst_12 : f32 to vector<16x128xf32>
      %c0_13 = arith.constant 0 : index
      %c0_14 = arith.constant 0 : index
      %17 = vector.load %arg9[%c0_13, %c0_14] : memref<16x128xf32, #tpu.memory_space<vmem>>, vector<16x128xf32>
      tpu.vector_store %arg9[%c0_13, %c0_14], %16 {strides = array<i32>} : memref<16x128xf32, #tpu.memory_space<vmem>>, vector<16x128xf32>,
    } else {
    }
    %c0 = arith.constant 0 : index
    %c0_1 = arith.constant 0 : index
    %3 = vector.load %arg9[%c0, %c0_1] : memref<16x128xf32, #tpu.memory_space<vmem>>, vector<16x128xf32>
    %c0_2 = arith.constant 0 : index
    %c0_3 = arith.constant 0 : index
    %c0_4 = arith.constant 0 : index
    %4 = vector.load %arg4[%c0_2, %c0_3, %c0_4] : memref<1x16x32xi8, #tpu.memory_space<vmem>>, vector<1x16x32xi8>
    %5 = vector.shape_cast %4 : vector<1x16x32xi8> to vector<16x32xi8>
    %6 = arith.sitofp %5 : vector<16x32xi8> to vector<16x32xbf16>
    %c0_5 = arith.constant 0 : index
    %c0_6 = arith.constant 0 : index
    %c0_7 = arith.constant 0 : index
    %7 = vector.load %arg5[%c0_5, %c0_6, %c0_7] : memref<1x32x128xi8, #tpu.memory_space<vmem>>, vector<1x32x128xi8>
    %8 = vector.shape_cast %7 : vector<1x32x128xi8> to vector<32x128xi8>
    %9 = arith.sitofp %8 : vector<32x128xi8> to vector<32x128xbf16>
    %cst = arith.constant dense<0.000000e+00> : vector<16x128xf32>
    %10 = tpu.matmul %6, %9, %cst {dimension_numbers = #tpu.dot_dimension_numbers<[1], [0], [0], [1], [0, 0, 1, 1], [], []>} : vector<16x32xbf16>, vector<32x128xbf16>, vector<16x128xf32> -> vector<16x128xf32>
    %11 = arith.addf %3, %10 : vector<16x128xf32>
    %c0_8 = arith.constant 0 : index
    %c0_9 = arith.constant 0 : index
    %12 = vector.load %arg9[%c0_8, %c0_9] : memref<16x128xf32, #tpu.memory_space<vmem>>, vector<16x128xf32>
    tpu.vector_store %arg9[%c0_8, %c0_9], %11 {strides = array<i32>} : memref<16x128xf32, #tpu.memory_space<vmem>>, vector<16x128xf32>,
    %c0_i32_10 = arith.constant 0 : i32
    %13 = arith.cmpi eq, %arg3, %c0_i32_10 : i32
    %14 = arith.extui %13 : i1 to i32
    %c0_i32_11 = arith.constant 0 : i32
    %15 = arith.cmpi ne, %14, %c0_i32_11 : i32
    scf.if %15 {
      %c0_12 = arith.constant 0 : index
      %c0_13 = arith.constant 0 : index
      %16 = vector.load %arg9[%c0_12, %c0_13] : memref<16x128xf32, #tpu.memory_space<vmem>>, vector<16x128xf32>
      %c0_14 = arith.constant 0 : index
      %c0_15 = arith.constant 0 : index
      %c0_16 = arith.constant 0 : index
      %17 = vector.load %arg7[%c0_14, %c0_15, %c0_16] : memref<1x1x128xf32, #tpu.memory_space<vmem>>, vector<1x1x128xf32>
      %18 = vector.shape_cast %17 : vector<1x1x128xf32> to vector<1x128xf32>
      %cst_17 = arith.constant 3.000000e+00 : f32
      %19 = vector.broadcast %cst_17 : f32 to vector<1x128xf32>
      %20 = arith.mulf %19, %18 : vector<1x128xf32>
      %21 = vector.broadcast %20 : vector<1x128xf32> to vector<16x128xf32>
      %22 = arith.subf %16, %21 : vector<16x128xf32>
      %c0_18 = arith.constant 0 : index
      %c0_19 = arith.constant 0 : index
      %c0_20 = arith.constant 0 : index
      %23 = vector.load %arg6[%c0_18, %c0_19, %c0_20] : memref<1x16x1xf32, #tpu.memory_space<vmem>>, vector<1x16x1xf32>
      %24 = vector.shape_cast %23 : vector<1x16x1xf32> to vector<16x1xf32>
      %cst_21 = arith.constant -2.000000e+00 : f32
      %25 = vector.broadcast %cst_21 : f32 to vector<16x1xf32>
      %26 = arith.mulf %25, %24 : vector<16x1xf32>
      %27 = vector.broadcast %26 : vector<16x1xf32> to vector<16x128xf32>
      %28 = arith.subf %22, %27 : vector<16x128xf32>
      %cst_22 = arith.constant -1.920000e+02 : f32
      %29 = vector.broadcast %cst_22 : f32 to vector<16x128xf32>
      %30 = arith.addf %28, %29 : vector<16x128xf32>
      %cst_23 = arith.constant 7.000000e-03 : f32
      %31 = vector.broadcast %cst_23 : f32 to vector<16x128xf32>
      %32 = arith.mulf %30, %31 : vector<16x128xf32>
      %cst_24 = arith.constant 5.000000e+00 : f32
      %33 = vector.broadcast %cst_24 : f32 to vector<16x128xf32>
      %34 = arith.addf %32, %33 : vector<16x128xf32>
      %cst_25 = arith.constant -1.280000e+02 : f32
      %cst_26 = arith.constant 1.270000e+02 : f32
      %35 = vector.broadcast %cst_25 : f32 to vector<16x128xf32>
      %36 = arith.maximumf %35, %34 : vector<16x128xf32>
      %37 = vector.broadcast %cst_26 : f32 to vector<16x128xf32>
      %38 = arith.minimumf %37, %36 : vector<16x128xf32>
      %39 = arith.fptosi %38 : vector<16x128xf32> to vector<16x128xi8>
      %c0_27 = arith.constant 0 : index
      %c0_28 = arith.constant 0 : index
      %c0_29 = arith.constant 0 : index
      %40 = vector.load %arg8[%c0_27, %c0_28, %c0_29] : memref<1x16x128xi8, #tpu.memory_space<vmem>>, vector<1x16x128xi8>
      %41 = vector.shape_cast %40 : vector<1x16x128xi8> to vector<16x128xi8>
      %42 = vector.shape_cast %39 : vector<16x128xi8> to vector<1x16x128xi8>
      tpu.vector_store %arg8[%c0_27, %c0_28, %c0_29], %42 {strides = array<i32>} : memref<1x16x128xi8, #tpu.memory_space<vmem>>, vector<1x16x128xi8>,
    } else {
    }
    return
  }
  func.func @transform_0(%arg0: i32, %arg1: i32, %arg2: i32, %arg3: i32) -> (i32, i32, i32) {
    %c0_i32 = arith.constant 0 : i32
    return %arg0, %arg1, %arg3 : i32, i32, i32
  }
  func.func @transform_1(%arg0: i32, %arg1: i32, %arg2: i32, %arg3: i32) -> (i32, i32, i32) {
    %c0_i32 = arith.constant 0 : i32
    return %arg0, %arg3, %arg2 : i32, i32, i32
  }
  func.func @transform_2(%arg0: i32, %arg1: i32, %arg2: i32, %arg3: i32) -> (i32, i32, i32) {
    %c0_i32 = arith.constant 0 : i32
    %c0_i32_0 = arith.constant 0 : i32
    return %arg0, %arg1, %c0_i32 : i32, i32, i32
  }
  func.func @transform_3(%arg0: i32, %arg1: i32, %arg2: i32, %arg3: i32) -> (i32, i32, i32) {
    %c0_i32 = arith.constant 0 : i32
    %c0_i32_0 = arith.constant 0 : i32
    return %arg0, %c0_i32, %arg2 : i32, i32, i32
  }
  func.func @transform_4(%arg0: i32, %arg1: i32, %arg2: i32, %arg3: i32) -> (i32, i32, i32) {
    %c0_i32 = arith.constant 0 : i32
    return %arg0, %arg1, %arg2 : i32, i32, i32
  }
}

</mosaic_0001>

<llo_original>
// kernel: bmm_s8ts8ns8t.1
$region0: #{bmm_s8ts8ns8t.1}
  #allocation0 [shape = 'u32[]', space=smem, size = 0x4, offset = 0x4, fixed_abs, tag = 'smem constant byte address 0x4 - core index']
  #allocation1 [shape = 'u32[72,128]{1,0:T(1,128)}', space=vmem, size = 0x9000, scoped, tag = 'internal scratch']
  #allocation2 [shape = 'f32[16,128]{1,0:T(8,128)}', space=vmem, size = 0x2000, scoped, tag = 'scratch operand']
  %s0 = inlined_call_operand.vmem [shape: s8[2,16,32], index: 0, kind: input, shape index: {}]
  %s1 = inlined_call_operand.vmem [shape: s8[2,32,128], index: 1, kind: input, shape index: {}]
  %s2 = inlined_call_operand.vmem [shape: f32[2,16,1], index: 2, kind: input, shape index: {}]
  %s3 = inlined_call_operand.vmem [shape: f32[2,1,128], index: 3, kind: input, shape index: {}]
  %s4 = inlined_call_operand.hbm [shape: s8[2,16,128], index: 4, kind: output, shape index: {}]
  %s5 = sld [smem:[#allocation0]]
  $region57: #{bmm_s8ts8ns8t.1} parent=0
    _
  %s7 = ssub.s32 1, %s5
  %s8 = scalar_select 0, %s7, %s5
  $region1: #{bmm_s8ts8ns8t.1} parent=0
    #allocation3 [shape = 'u8[4096]{0}', space=vmem, size = 0x1000, scoped, tag = 'output window, operand 0']
    #allocation4 [shape = 's32[2]{0}', space=sflag, size = 0x8, scoped, tag = 'scoped memory for bmm_s8ts8ns8t.1']
    %9 = vsyncpa [#allocation4], 0
    %s10 = scalar_lea.sflag [#allocation4], 1
    %11 = vsyncpa %s10, 0
    loop: start=0, step=1, limit=4
    $region2: #{bmm_s8ts8ns8t.1} parent=1 // loop_pre_header
      _
    $region3: #{bmm_s8ts8ns8t.1} parent=1 // loop_header
      %s13 = sphi 0, %s17
      %p14 = scmp.ge.s32.totalorder %s13, 4
      %s20 = sphi 0, %s46
      %s21 = sphi 0, %s42
      %s22 = sphi 0, %s38
      %s23 = sphi 0, %s34
      %s24 = sphi 0, %s20
      %s25 = sphi 0, %s21
      %s26 = sphi 0, %s22
      %s27 = sphi 0, %s23
      %s28 = sphi 0, %s24
      %s29 = sphi 0, %s25
      %s30 = sphi 0, %s26
      %s31 = sphi 0, %s27
      %s53 = sphi 0, %s55
      %s56 = sphi 0, %s53
      %s57 = sphi 0, %s56
      %s73 = sphi 0, %s57
      %s83 = sphi 0, %s85
      %s86 = sphi 0, %s83
      %s87 = sphi 0, %s86
      %s103 = sphi 0, %s87
      %s111 = sphi 0, %s113
      %s114 = sphi 0, %s111
      %s115 = sphi 0, %s114
      %s131 = sphi 0, %s115
      %s139 = sphi 0, %s141
      %s142 = sphi 0, %s139
      %s143 = sphi 0, %s142
      %s159 = sphi 0, %s143
      %s169 = sphi 0, %s171
      %s172 = sphi 0, %s169
      %s173 = sphi 0, %s172
      %s189 = sphi 0, %s173
    $region4: #{bmm_s8ts8ns8t.1} parent=1 // loop_header_branch
      %16 = sbr.rel (%p14) target = $region8
    $region5: #{bmm_s8ts8ns8t.1} parent=1 // loop_body
      %s18 = ssub.s32 %s13, 1
      %s19 = ssub.s32 %s13, 2
      %s32 = sadd.s32 1, %s23
      %p33 = scmp.ge.s32.totalorder %s32, 1
      %s34 = scalar_select %p33, 0, %s32
      %s35 = sadd.s32 1, %s22
      %s36 = scalar_select %p33, %s35, %s22
      %p37 = scmp.ge.s32.totalorder %s36, 1
      %s38 = scalar_select %p37, 0, %s36
      %s39 = sadd.s32 1, %s21
      %s40 = scalar_select %p37, %s39, %s21
      %p41 = scmp.ge.s32.totalorder %s40, 1
      %s42 = scalar_select %p41, 0, %s40
      %s43 = sadd.s32 1, %s20
      %s44 = scalar_select %p41, %s43, %s20
      %p45 = scmp.ge.s32.totalorder %s44, 2
      %s46 = scalar_select %p45, 0, %s44
      %s47 = ssub.s32 %s20, %s46
      %s48 = ssub.s32 %s21, %s42
      %s49 = sor.u32 %s47, %s48
      %s50 = ssub.s32 %s23, %s34
      %s51 = sor.u32 %s49, %s50
      %p52 = scmp.eq.s32.totalorder %s51, 0
      %s54 = sadd.s32 %s53, 1
      %s55 = scalar_select %p52, %s53, %s54
      %p58 = pneg %p52
      %p59 = scmp.eq.s32.totalorder %s13, 1
      %p60 = por %p58, %p59
      %p61 = scmp.ne.s32.totalorder %s53, %s56
      %p62 = scmp.eq.s32.totalorder %s13, 0
      %p63 = por %p61, %p62
      %p64 = scmp.ne.s32.totalorder %s53, %s56
      %p65 = scmp.eq.s32.totalorder %s18, 1
      %p66 = por %p64, %p65
      %p67 = scmp.ne.s32.totalorder %s56, %s57
      %p68 = scmp.eq.s32.totalorder %s18, 0
      %p69 = por %p67, %p68
      %p70 = scmp.ne.s32.totalorder %s56, %s57
      %p71 = scmp.eq.s32.totalorder %s19, 1
      %p72 = por %p70, %p71
      %p74 = scmp.ne.s32.totalorder %s57, %s73
      %p75 = scmp.eq.s32.totalorder %s19, 0
      %p76 = por %p74, %p75
      %s77 = ssub.s32 %s20, %s46
      %s78 = ssub.s32 %s23, %s34
      %s79 = sor.u32 %s77, %s78
      %s80 = ssub.s32 %s22, %s38
      %s81 = sor.u32 %s79, %s80
      %p82 = scmp.eq.s32.totalorder %s81, 0
      %s84 = sadd.s32 %s83, 1
      %s85 = scalar_select %p82, %s83, %s84
      %p88 = pneg %p82
      %p89 = scmp.eq.s32.totalorder %s13, 1
      %p90 = por %p88, %p89
      %p91 = scmp.ne.s32.totalorder %s83, %s86
      %p92 = scmp.eq.s32.totalorder %s13, 0
      %p93 = por %p91, %p92
      %p94 = scmp.ne.s32.totalorder %s83, %s86
      %p95 = scmp.eq.s32.totalorder %s18, 1
      %p96 = por %p94, %p95
      %p97 = scmp.ne.s32.totalorder %s86, %s87
      %p98 = scmp.eq.s32.totalorder %s18, 0
      %p99 = por %p97, %p98
      %p100 = scmp.ne.s32.totalorder %s86, %s87
      %p101 = scmp.eq.s32.totalorder %s19, 1
      %p102 = por %p100, %p101
      %p104 = scmp.ne.s32.totalorder %s87, %s103
      %p105 = scmp.eq.s32.totalorder %s19, 0
      %p106 = por %p104, %p105
      %s107 = ssub.s32 %s20, %s46
      %s108 = ssub.s32 %s21, %s42
      %s109 = sor.u32 %s107, %s108
      %p110 = scmp.eq.s32.totalorder %s109, 0
      %s112 = sadd.s32 %s111, 1
      %s113 = scalar_select %p110, %s111, %s112
      %p116 = pneg %p110
      %p117 = scmp.eq.s32.totalorder %s13, 1
      %p118 = por %p116, %p117
      %p119 = scmp.ne.s32.totalorder %s111, %s114
      %p120 = scmp.eq.s32.totalorder %s13, 0
      %p121 = por %p119, %p120
      %p122 = scmp.ne.s32.totalorder %s111, %s114
      %p123 = scmp.eq.s32.totalorder %s18, 1
      %p124 = por %p122, %p123
      %p125 = scmp.ne.s32.totalorder %s114, %s115
      %p126 = scmp.eq.s32.totalorder %s18, 0
      %p127 = por %p125, %p126
      %p128 = scmp.ne.s32.totalorder %s114, %s115
      %p129 = scmp.eq.s32.totalorder %s19, 1
      %p130 = por %p128, %p129
      %p132 = scmp.ne.s32.totalorder %s115, %s131
      %p133 = scmp.eq.s32.totalorder %s19, 0
      %p134 = por %p132, %p133
      %s135 = ssub.s32 %s20, %s46
      %s136 = ssub.s32 %s22, %s38
      %s137 = sor.u32 %s135, %s136
      %p138 = scmp.eq.s32.totalorder %s137, 0
      %s140 = sadd.s32 %s139, 1
      %s141 = scalar_select %p138, %s139, %s140
      %p144 = pneg %p138
      %p145 = scmp.eq.s32.totalorder %s13, 1
      %p146 = por %p144, %p145
      %p147 = scmp.ne.s32.totalorder %s139, %s142
      %p148 = scmp.eq.s32.totalorder %s13, 0
      %p149 = por %p147, %p148
      %p150 = scmp.ne.s32.totalorder %s139, %s142
      %p151 = scmp.eq.s32.totalorder %s18, 1
      %p152 = por %p150, %p151
      %p153 = scmp.ne.s32.totalorder %s142, %s143
      %p154 = scmp.eq.s32.totalorder %s18, 0
      %p155 = por %p153, %p154
      %p156 = scmp.ne.s32.totalorder %s142, %s143
      %p157 = scmp.eq.s32.totalorder %s19, 1
      %p158 = por %p156, %p157
      %p160 = scmp.ne.s32.totalorder %s143, %s159
      %p161 = scmp.eq.s32.totalorder %s19, 0
      %p162 = por %p160, %p161
      %s163 = ssub.s32 %s20, %s46
      %s164 = ssub.s32 %s21, %s42
      %s165 = sor.u32 %s163, %s164
      %s166 = ssub.s32 %s22, %s38
      %s167 = sor.u32 %s165, %s166
      %p168 = scmp.eq.s32.totalorder %s167, 0
      %s170 = sadd.s32 %s169, 1
      %s171 = scalar_select %p168, %s169, %s170
      %p174 = pneg %p168
      %p175 = scmp.eq.s32.totalorder %s13, 1
      %p176 = por %p174, %p175
      %p177 = scmp.ne.s32.totalorder %s169, %s172
      %p178 = scmp.eq.s32.totalorder %s13, 0
      %p179 = por %p177, %p178
      %p180 = scmp.ne.s32.totalorder %s169, %s172
      %p181 = scmp.eq.s32.totalorder %s18, 1
      %p182 = por %p180, %p181
      %p183 = scmp.ne.s32.totalorder %s172, %s173
      %p184 = scmp.eq.s32.totalorder %s18, 0
      %p185 = por %p183, %p184
      %p186 = scmp.ne.s32.totalorder %s172, %s173
      %p187 = scmp.eq.s32.totalorder %s19, 1
      %p188 = por %p186, %p187
      %p190 = scmp.ne.s32.totalorder %s173, %s189
      %p191 = scmp.eq.s32.totalorder %s19, 0
      %p192 = por %p190, %p191
      %p193 = scmp.le.s32.totalorder 1, %s13
      %p194 = scmp.lt.s32.totalorder %s13, 3
      %p195 = pnand %p193, %p194
      %p196 = pneg %p195
      // Predicated region
      $region9: #{bmm_s8ts8ns8t.1} parent=5 // pred_check
        _
      $region10: #{bmm_s8ts8ns8t.1} parent=5 // pred_check_branch
        %198 = sbr.rel (%p195) target = $region12
      $region11: #{bmm_s8ts8ns8t.1} parent=5 // pred_region
        %s199 = ssub.s32 %s13, 1
      $region12: #{bmm_s8ts8ns8t.1} parent=5 // pred_fallthru
        _
      %p200 = scmp.lt.s32.totalorder %s13, 2
      // Predicated region
      $region13: #{bmm_s8ts8ns8t.1} parent=5 // pred_check
        %p201 = pneg %p200
      $region14: #{bmm_s8ts8ns8t.1} parent=5 // pred_check_branch
        %203 = sbr.rel (%p201) target = $region16
      $region15: #{bmm_s8ts8ns8t.1} parent=5 // pred_region
        // Predicated region
        $region17: #{bmm_s8ts8ns8t.1} parent=15 // pred_check
          %p204 = pneg %p63
        $region18: #{bmm_s8ts8ns8t.1} parent=15 // pred_check_branch
          %206 = sbr.rel (%p204) target = $region20
        $region19: #{bmm_s8ts8ns8t.1} parent=15 // pred_region
          %s207 = smul.u32 2, %s21
          %p208 = scmp.lt.s32.totalorder %s20, 1
          %s209 = scalar_select %p208, %s20, 1
          %p210 = scmp.lt.s32.totalorder %s207, 1
          %s211 = scalar_select %p210, %s207, 1
          %p212 = scmp.lt.s32.totalorder %s23, 0
          %s213 = scalar_select %p212, %s23, 0
          %s214 = sadd.s32 %s213, %s211
          %s215 = smul.addr %s209, 2
          %s216 = sadd.s32 %s214, %s215
          %s217 = smul.addr %s216, 2
          %s218 = scalar_lea.vmem %s0, %s217
          %s219 = smul.u32 2, %s21
        $region20: #{bmm_s8ts8ns8t.1} parent=15 // pred_fallthru
          _
        // Predicated region
        $region21: #{bmm_s8ts8ns8t.1} parent=15 // pred_check
          %p220 = pneg %p93
        $region22: #{bmm_s8ts8ns8t.1} parent=15 // pred_check_branch
          %222 = sbr.rel (%p220) target = $region24
        $region23: #{bmm_s8ts8ns8t.1} parent=15 // pred_region
          %p223 = scmp.lt.s32.totalorder %s20, 1
          %s224 = scalar_select %p223, %s20, 1
          %p225 = scmp.lt.s32.totalorder %s23, 0
          %s226 = scalar_select %p225, %s23, 0
          %p227 = scmp.lt.s32.totalorder %s22, 0
          %s228 = scalar_select %p227, %s22, 0
          %s229 = sadd.s32 %s228, %s226
          %s230 = sadd.s32 %s229, %s224
          %s231 = smul.addr %s230, 8
          %s232 = scalar_lea.vmem %s1, %s231
        $region24: #{bmm_s8ts8ns8t.1} parent=15 // pred_fallthru
          _
        // Predicated region
        $region25: #{bmm_s8ts8ns8t.1} parent=15 // pred_check
          %p233 = pneg %p121
        $region26: #{bmm_s8ts8ns8t.1} parent=15 // pred_check_branch
          %235 = sbr.rel (%p233) target = $region28
        $region27: #{bmm_s8ts8ns8t.1} parent=15 // pred_region
          %s236 = smul.u32 2, %s21
          %p237 = scmp.lt.s32.totalorder %s20, 1
          %s238 = scalar_select %p237, %s20, 1
          %p239 = scmp.lt.s32.totalorder %s236, 1
          %s240 = scalar_select %p239, %s236, 1
          %s241 = smul.addr %s238, 2
          %s242 = sadd.s32 %s240, %s241
          %s243 = smul.addr %s242, 8
          %s244 = scalar_lea.vmem %s2, %s243
          %s245 = smul.u32 2, %s21
        $region28: #{bmm_s8ts8ns8t.1} parent=15 // pred_fallthru
          _
        // Predicated region
        $region29: #{bmm_s8ts8ns8t.1} parent=15 // pred_check
          %p246 = pneg %p149
        $region30: #{bmm_s8ts8ns8t.1} parent=15 // pred_check_branch
          %248 = sbr.rel (%p246) target = $region32
        $region31: #{bmm_s8ts8ns8t.1} parent=15 // pred_region
          %p249 = scmp.lt.s32.totalorder %s20, 1
          %s250 = scalar_select %p249, %s20, 1
          %p251 = scmp.lt.s32.totalorder %s22, 0
          %s252 = scalar_select %p251, %s22, 0
          %s253 = sadd.s32 %s252, %s250
          %s254 = scalar_lea.vmem %s3, %s253
        $region32: #{bmm_s8ts8ns8t.1} parent=15 // pred_fallthru
          _
      $region16: #{bmm_s8ts8ns8t.1} parent=5 // pred_fallthru
        _
      %p255 = scmp.le.s32.totalorder 1, %s13
      %p256 = scmp.lt.s32.totalorder %s13, 3
      %p257 = pnand %p255, %p256
      %p258 = pneg %p257
      // Predicated region
      $region33: #{bmm_s8ts8ns8t.1} parent=5 // pred_check
        _
      $region34: #{bmm_s8ts8ns8t.1} parent=5 // pred_check_branch
        %260 = sbr.rel (%p257) target = $region36
      $region35: #{bmm_s8ts8ns8t.1} parent=5 // pred_region
        %s261 = ssub.s32 %s13, 1
        %s262 = smul.u32 2, %s25
        %p263 = scmp.lt.s32.totalorder %s24, 1
        %s264 = scalar_select %p263, %s24, 1
        %p265 = scmp.lt.s32.totalorder %s262, 1
        %s266 = scalar_select %p265, %s262, 1
        %p267 = scmp.lt.s32.totalorder %s27, 0
        %s268 = scalar_select %p267, %s27, 0
        %s269 = sadd.s32 %s268, %s266
        %s270 = smul.addr %s264, 2
        %s271 = sadd.s32 %s269, %s270
        %s272 = smul.addr %s271, 2
        %s273 = scalar_lea.vmem %s0, %s272
        %p274 = pneg %p69
        %p275 = pneg %p66
        %p276 = scmp.lt.s32.totalorder %s24, 1
        %s277 = scalar_select %p276, %s24, 1
        %p278 = scmp.lt.s32.totalorder %s27, 0
        %s279 = scalar_select %p278, %s27, 0
        %p280 = scmp.lt.s32.totalorder %s26, 0
        %s281 = scalar_select %p280, %s26, 0
        %s282 = sadd.s32 %s281, %s279
        %s283 = sadd.s32 %s282, %s277
        %s284 = smul.addr %s283, 8
        %s285 = scalar_lea.vmem %s1, %s284
        %p286 = pneg %p99
        %p287 = pneg %p96
        %s288 = smul.u32 2, %s25
        %p289 = scmp.lt.s32.totalorder %s24, 1
        %s290 = scalar_select %p289, %s24, 1
        %p291 = scmp.lt.s32.totalorder %s288, 1
        %s292 = scalar_select %p291, %s288, 1
        %s293 = smul.addr %s290, 2
        %s294 = sadd.s32 %s292, %s293
        %s295 = smul.addr %s294, 8
        %s296 = scalar_lea.vmem %s2, %s295
        %p297 = pneg %p127
        %p298 = pneg %p124
        %p299 = scmp.lt.s32.totalorder %s24, 1
        %s300 = scalar_select %p299, %s24, 1
        %p301 = scmp.lt.s32.totalorder %s26, 0
        %s302 = scalar_select %p301, %s26, 0
        %s303 = sadd.s32 %s302, %s300
        %s304 = scalar_lea.vmem %s3, %s303
        %p305 = pneg %p155
        %p306 = pneg %p152
        %p307 = pneg %p185
        %p308 = pneg %p182
        %s309 = sand.u32 %s172, 1
        %s310 = scalar_lea.sflag [#allocation4], %s309
        %s311 = sand.u32 %s172, 1
        %s312 = smul.addr %s311, 4
        %s313 = scalar_lea.vmem [#allocation3], %s312
        %s314 = smul.u32 2, %s25
        %p315 = scmp.lt.s32.totalorder %s24, 1
        %s316 = scalar_select %p315, %s24, 1
        %p317 = scmp.lt.s32.totalorder %s314, 1
        %s318 = scalar_select %p317, %s314, 1
        %p319 = scmp.lt.s32.totalorder %s27, 0
        %s320 = scalar_select %p319, %s27, 0
        %s321 = sadd.s32 %s320, %s318
        %s322 = smul.addr %s316, 2
        %s323 = sadd.s32 %s321, %s322
        %s324 = smul.addr %s323, 2
        %s325 = scalar_lea.vmem %s0, %s324
        %s326 = smul.u32 2, %s25
        %p327 = scmp.lt.s32.totalorder %s24, 1
        %s328 = scalar_select %p327, %s24, 1
        %p329 = scmp.lt.s32.totalorder %s27, 0
        %s330 = scalar_select %p329, %s27, 0
        %p331 = scmp.lt.s32.totalorder %s26, 0
        %s332 = scalar_select %p331, %s26, 0
        %s333 = sadd.s32 %s332, %s330
        %s334 = sadd.s32 %s333, %s328
        %s335 = smul.addr %s334, 8
        %s336 = scalar_lea.vmem %s1, %s335
        %s337 = smul.u32 2, %s25
        %p338 = scmp.lt.s32.totalorder %s24, 1
        %s339 = scalar_select %p338, %s24, 1
        %p340 = scmp.lt.s32.totalorder %s337, 1
        %s341 = scalar_select %p340, %s337, 1
        %s342 = smul.addr %s339, 2
        %s343 = sadd.s32 %s341, %s342
        %s344 = smul.addr %s343, 8
        %s345 = scalar_lea.vmem %s2, %s344
        %s346 = smul.u32 2, %s25
        %p347 = scmp.lt.s32.totalorder %s24, 1
        %s348 = scalar_select %p347, %s24, 1
        %p349 = scmp.lt.s32.totalorder %s26, 0
        %s350 = scalar_select %p349, %s26, 0
        %s351 = sadd.s32 %s350, %s348
        %s352 = scalar_lea.vmem %s3, %s351
        %s353 = smul.u32 2, %s25
        %p355 = scmp.eq.s32.totalorder %s27, 0
        // Predicated region
        $region37: #{bmm_s8ts8ns8t.1} parent=35 // pred_check
          %p356 = pneg %p355
        $region38: #{bmm_s8ts8ns8t.1} parent=35 // pred_check_branch
          %358 = sbr.rel (%p356) target = $region40
        $region39: #{bmm_s8ts8ns8t.1} parent=35 // pred_region
          %359 = vst [vmem:[#allocation2] sm:$0xff] 0.0
          %360 = vst [vmem:[#allocation2 + $0x8] sm:$0xff] 0.0
        $region40: #{bmm_s8ts8ns8t.1} parent=35 // pred_fallthru
          _
        %v361 = vld [vmem:[#allocation2] sm:$0xff]
        %v362 = vld [vmem:[#allocation2 + $0x8] sm:$0xff]
        %v363 = vld [vmem:[%s325] sm:$0x3]
        %v364 = vld [vmem:[%s325 + $0x2] sm:$0x3]
        %v365 = vunpack.c.0.s8 %v363
        %v366 = vunpack.c.0.s8 %v364
        %v367 = vcvt.s32.f32 %v365
        %v368 = vcvt.s32.f32 %v366
        %v369 = vpack.c.bf16 %v368, %v367
        %v370 = vld [vmem:[%s336] sm:$0xff]
        %v371 = vunpack.c.0.s8 %v370
        %v372 = vunpack.c.1.s8 %v370
        %v373 = vunpack.c.2.s8 %v370
        %v374 = vunpack.c.3.s8 %v370
        %v375 = vcvt.s32.f32 %v371
        %v376 = vcvt.s32.f32 %v372
        %v377 = vcvt.s32.f32 %v373
        %v378 = vcvt.s32.f32 %v374
        %v379 = vpack.c.bf16 %v376, %v375
        %v380 = vpack.c.bf16 %v378, %v377
        %vm381 = vcmask 261120
        %v383 = vsel %vm381, %v369, 0
        %385 = vmatpush.bf16.msra.mxu0 0
        %386 = vmatpush.bf16.msra.mxu0 0
        %387 = vmatpush.bf16.msra.mxu0 0
        %388 = vmatpush.bf16.msra.mxu0 0
        %389 = vmatpush.bf16.msra.mxu0 0
        %390 = vmatpush.bf16.msra.mxu0 0
        %391 = vmatpush.bf16.msra.mxu0 %v380
        %392 = vmatpush.bf16.msra.mxu0 %v379
        %393 = vmatmul.bf16.gmra.mxu0 %v383
        %v394 = vpop.f32.mrf.mxu0
        %v395 = vadd.f32 0.0, %v394
        %v396 = vpop.f32.mrf.mxu0
        %v397 = vadd.f32 0.0, %v396
        %398 = vdwg.mxu0
        %v399 = vadd.f32 %v361, %v395
        %v400 = vadd.f32 %v362, %v397
        %401 = vst [vmem:[#allocation2] sm:$0xff] %v399
        %402 = vst [vmem:[#allocation2 + $0x8] sm:$0xff] %v400
        // Predicated region
        $region41: #{bmm_s8ts8ns8t.1} parent=35 // pred_check
          %p403 = pneg %p355
        $region42: #{bmm_s8ts8ns8t.1} parent=35 // pred_check_branch
          %405 = sbr.rel (%p403) target = $region44
        $region43: #{bmm_s8ts8ns8t.1} parent=35 // pred_region
          %v406 = vld [vmem:[#allocation2] sm:$0xff]
          %v407 = vld [vmem:[#allocation2 + $0x8] sm:$0xff]
          %v408 = vld [vmem:[%s352] sm:$0x1]
          %v409 = vmul.f32 %v408, 3.0
          %v411 = vperm.slane %v409, 0
          %v413 = vsub.f32 %v406, %v411
          %v414 = vsub.f32 %v407, %v411
          %v415 = vld [vmem:[%s345] sm:$0xff]
          %v416 = vld [vmem:[%s345 + $0x8] sm:$0xff]
          %v417 = vmul.f32 %v415, -2.0
          %v418 = vmul.f32 %v416, -2.0
          %420 = vset.pattern.permute.xlu0 0
          %421 = vperm.xlu0 %420, %v417
          %v422 = vpop.permute.xlu0 %421
          %425 = vset.pattern.permute.xlu0 0
          %426 = vperm.xlu0 %425, %v418
          %v427 = vpop.permute.xlu0 %426
          %v429 = vsub.f32 %v413, %v422
          %v430 = vsub.f32 %v414, %v427
          %v431 = vadd.f32 %v429, -192.0
          %v432 = vadd.f32 %v430, -192.0
          %v433 = vmul.f32 %v431, 0.007
          %v434 = vmul.f32 %v432, 0.007
          %v435 = vadd.f32 %v433, 5.0
          %v436 = vadd.f32 %v434, 5.0
          %v437 = vmax.f32 %v435, -128.0
          %v438 = vmax.f32 %v436, -128.0
          %v439 = vmin.f32 %v437, 127.0
          %v440 = vmin.f32 %v438, 127.0
          %v441 = vmax.f32 %v439, -128.0
          %v442 = vmax.f32 %v440, -128.0
          %v443 = vmin.f32 %v441, 127.0
          %v444 = vmin.f32 %v442, 127.0
          %v445 = vcvt.f32.s32.to.zero.pseudo %v443
          %v446 = vcvt.f32.s32.to.zero.pseudo %v444
          %v447 = vpack.c.b16 %v445, %v445
          %v448 = vpack.c.b8 %v447, %v447
          %v449 = vpack.c.b16 %v446, %v446
          %v450 = vpack.c.b8 %v449, %v449
          %451 = vst [vmem:[%s313] sm:$0x3] %v448
          %452 = vst [vmem:[%s313 + $0x2] sm:$0x3] %v450
        $region44: #{bmm_s8ts8ns8t.1} parent=35 // pred_fallthru
          _
        %s453 = sand.u32 %s172, 1
        %s454 = scalar_lea.sflag [#allocation4], %s453
        %s455 = sand.u32 %s172, 1
        %s456 = smul.addr %s455, 4
        %s457 = scalar_lea.vmem [#allocation3], %s456
        // Predicated region
        $region45: #{bmm_s8ts8ns8t.1} parent=35 // pred_check
          %p458 = pneg %p182
        $region46: #{bmm_s8ts8ns8t.1} parent=35 // pred_check_branch
          %460 = sbr.rel (%p458) target = $region48
        $region47: #{bmm_s8ts8ns8t.1} parent=35 // pred_region
          %s461 = smul.u32 2, %s25
          %463 = vsyncadd %s454, 0
          %s464 = sadd.s32 %s26, %s461
          %s465 = smul.addr %s24, 2
          %s466 = sadd.s32 %s464, %s465
          %s467 = smul.addr %s466, 2
          %s468 = scalar_lea.hbm %s4, %s467
          %s469 = sshll.u32 %s457, 4
          %s470 = int_to_ptr.vmem [resolvable:$true] %s469
          %s471 = sshll.u32 %s468, 4
          %s472 = int_to_ptr.hbm [resolvable:$true] %s471
          %477 = dma.vmem_to_hbm [thread:$0]  %s470, 64, %s472, %s454, 32, 32, 2
        $region48: #{bmm_s8ts8ns8t.1} parent=35 // pred_fallthru
          _
      $region36: #{bmm_s8ts8ns8t.1} parent=5 // pred_fallthru
        _
      %p478 = scmp.le.s32.totalorder 2, %s13
      // Predicated region
      $region49: #{bmm_s8ts8ns8t.1} parent=5 // pred_check
        %p479 = pneg %p478
      $region50: #{bmm_s8ts8ns8t.1} parent=5 // pred_check_branch
        %481 = sbr.rel (%p479) target = $region52
      $region51: #{bmm_s8ts8ns8t.1} parent=5 // pred_region
        %s482 = ssub.s32 %s13, 2
        // Predicated region
        $region53: #{bmm_s8ts8ns8t.1} parent=51 // pred_check
          %p483 = pneg %p188
        $region54: #{bmm_s8ts8ns8t.1} parent=51 // pred_check_branch
          %485 = sbr.rel (%p483) target = $region56
        $region55: #{bmm_s8ts8ns8t.1} parent=51 // pred_region
          %s486 = sand.u32 %s173, 1
          %s487 = scalar_lea.sflag [#allocation4], %s486
          %s488 = sand.u32 %s173, 1
          %s489 = smul.addr %s488, 4
          %s490 = scalar_lea.vmem [#allocation3], %s489
          %492 = dma.done %s487, 64
        $region56: #{bmm_s8ts8ns8t.1} parent=51 // pred_fallthru
          _
      $region52: #{bmm_s8ts8ns8t.1} parent=5 // pred_fallthru
        _
    $region6: #{bmm_s8ts8ns8t.1} parent=1 // loop_footer
      %s17 = sadd.s32 1, %s13
    $region7: #{bmm_s8ts8ns8t.1} parent=1 // loop_footer_branch
      %12 = sbr.rel target = $region3
    $region8: #{bmm_s8ts8ns8t.1} parent=1 // loop_exit
      _
    %493 = vsyncpa [#allocation4], 1
    %s494 = scalar_lea.sflag [#allocation4], 1
    %495 = vsyncpa %s494, 1

</llo_original>
